<compile_context>
chip_gen: v7x
topology: tpu7x:2x2x1
jax: 0.10.0
libtpu: 0.0.40
codegen_flags: <defaults>
</compile_context>

<pallas_src>
import jax
import jax.numpy as jnp
from jax.experimental import pallas as pl
from jax.experimental.pallas import tpu as pltpu

_EPS = 1e-12  # F.normalize default eps


def _l2_normalize(x):
    # F.normalize(x, dim=-1) == x / clamp(||x||_2, min=eps).
    # clamp(sqrt(s), eps) == sqrt(clamp(s, eps^2)), so rsqrt on the clamped
    # sum-of-squares preserves the semantics while using the EUP slot.
    sumsq = jnp.sum(x * x, axis=-1, keepdims=True)
    inv = jax.lax.rsqrt(jnp.maximum(sumsq, _EPS * _EPS))
    return x * inv


def _eval_kernel(feats_ref, keysn_ref, tasks_ref, rowmax_ref):
    feats = feats_ref[...]                       # (TB, D) f32
    kn = keysn_ref[...]                          # (T, D)  f32, pre-normalized
    fn = _l2_normalize(feats)
    # NT matmul: contract both operands on their last (lane) axis -> no keys
    # transpose before the MXU push.
    sim = jax.lax.dot_general(
        fn, kn, dimension_numbers=(((1,), (1,)), ((), ())),
        preferred_element_type=jnp.float32)      # (TB, T)
    m = jnp.max(sim, axis=-1, keepdims=True)     # (TB, 1)
    TB, T = sim.shape
    ids = jax.lax.broadcasted_iota(jnp.int32, (TB, T), 1)
    # first index attaining the max (torch.max semantics)
    tasks = jnp.min(jnp.where(sim == m, ids, jnp.int32(T)), axis=-1)  # (TB,)
    tasks_ref[...] = tasks[None, :].astype(jnp.int32)     # lane-dense (1, TB)
    rowmax_ref[...] = m[:, 0][None, :]                    # lane-dense (1, TB)


def _train_kernel(feats_ref, keyn_ref, dots_ref):
    feats = feats_ref[...]                       # (TB, D)
    kn = keyn_ref[...]                           # (1, D), pre-normalized
    fn = _l2_normalize(feats)
    d = jax.lax.dot_general(
        fn, kn, dimension_numbers=(((1,), (1,)), ((), ())),
        preferred_element_type=jnp.float32)      # (TB, 1) matvec on the MXU
    dots_ref[...] = d[:, 0][None, :]             # lane-dense (1, TB)


def _round_up(x, m):
    return ((x + m - 1) // m) * m


def _pad_batch(feats):
    """Pad batch to a multiple of 128 and pick a lane-dense tile size."""
    B = feats.shape[0]
    B_pad = _round_up(B, 128)
    TB = 128
    for cand in (1024, 512, 256, 128):           # biggest divisor of B_pad
        if B_pad % cand == 0:
            TB = cand
            break
    if B_pad != B:
        feats = jnp.pad(feats, ((0, B_pad - B), (0, 0)))  # zero rows -> sim 0
    return feats, B, B_pad, TB


def _call_eval(feats, keys_n_active):
    feats_p, B, B_pad, TB = _pad_batch(feats)
    D = feats_p.shape[1]
    T = keys_n_active.shape[0]
    nb = B_pad // TB
    tasks2d, rowmax2d = pl.pallas_call(
        _eval_kernel,
        out_shape=(jax.ShapeDtypeStruct((1, B_pad), jnp.int32),
                   jax.ShapeDtypeStruct((1, B_pad), jnp.float32)),
        grid=(nb,),
        in_specs=[pl.BlockSpec((TB, D), lambda i: (i, 0)),   # streamed feats
                  pl.BlockSpec((T, D), lambda i: (0, 0))],   # resident keys
        out_specs=(pl.BlockSpec((1, TB), lambda i: (0, i)),
                   pl.BlockSpec((1, TB), lambda i: (0, i))),
        compiler_params=pltpu.CompilerParams(
            dimension_semantics=("parallel",)),   # disjoint tiles -> megacore
    )(feats_p, keys_n_active)
    # TODO(synk): torch returns int64 task ids; JAX default config uses int32.
    tasks = tasks2d[0, :B]
    sim = jnp.mean(rowmax2d[0, :B])               # finalize the mean in JAX
    return tasks, sim


def _call_train(feats, keyn_row):
    feats_p, B, B_pad, TB = _pad_batch(feats)
    D = feats_p.shape[1]
    nb = B_pad // TB
    dots2d = pl.pallas_call(
        _train_kernel,
        out_shape=jax.ShapeDtypeStruct((1, B_pad), jnp.float32),
        grid=(nb,),
        in_specs=[pl.BlockSpec((TB, D), lambda i: (i, 0)),
                  pl.BlockSpec((1, D), lambda i: (0, 0))],
        out_specs=pl.BlockSpec((1, TB), lambda i: (0, i)),
        compiler_params=pltpu.CompilerParams(
            dimension_semantics=("parallel",)),
    )(feats_p, keyn_row)
    sim = jnp.sum(dots2d[0, :B]) / jnp.float32(B)
    # Constant-zero tasks: produced in the wrapper, not stored by the kernel.
    tasks = jnp.zeros((B,), dtype=jnp.int32)
    return tasks, sim


def _orthogonal_rows(key, num_tasks, embed_dim):
    # Mimics nn.init.orthogonal_ on a (num_tasks, embed_dim) matrix:
    # orthonormal rows (num_tasks <= embed_dim).
    a = jax.random.normal(key, (embed_dim, num_tasks), dtype=jnp.float32)
    q, r = jnp.linalg.qr(a)
    d = jnp.sign(jnp.diagonal(r))
    q = q * d[None, :]
    return q.T  # (num_tasks, embed_dim)


class TaskIdentifier:
    def __init__(self, num_tasks: int, embed_dim: int, rng_key):
        self.t = 0
        self.keys = _orthogonal_rows(rng_key, num_tasks, embed_dim)
        # Keys only change when parameters change; cache their normalization
        # so every forward only normalizes the streaming feats.
        self.keys_n = self.keys / jnp.maximum(
            jnp.linalg.norm(self.keys, axis=-1, keepdims=True), _EPS)

    def next_task(self):
        self.t += 1

    def forward(self, feats, training: bool = False):
        if training:
            return _call_train(feats, self.keys_n[self.t][None, :])   # (1, D)
        else:
            return _call_eval(feats, self.keys_n[: self.t + 1])       # (t+1, D)


def _ref_eval(feats, keys_active):
    fn = feats / jnp.maximum(
        jnp.linalg.norm(feats, axis=-1, keepdims=True), _EPS)
    kn = keys_active / jnp.maximum(
        jnp.linalg.norm(keys_active, axis=-1, keepdims=True), _EPS)
    sim = fn @ kn.T
    tasks = jnp.argmax(sim, axis=-1).astype(jnp.int32)
    return tasks, jnp.mean(jnp.max(sim, axis=-1))


def _ref_train(feats, key_row):
    fn = feats / jnp.maximum(
        jnp.linalg.norm(feats, axis=-1, keepdims=True), _EPS)
    kn = key_row / jnp.maximum(
        jnp.linalg.norm(key_row, axis=-1, keepdims=True), _EPS)
    return jnp.sum(fn * kn) / jnp.float32(feats.shape[0])


if __name__ == "__main__":
    num_tasks, embed_dim, batch = 4, 32, 8
    k0, k1 = jax.random.split(jax.random.PRNGKey(0))

    mod = TaskIdentifier(num_tasks, embed_dim, k0)
    mod.next_task()
    mod.next_task()  # t = 2 -> eval uses keys[:3]

    feats = jax.random.normal(k1, (batch, embed_dim), dtype=jnp.float32)

    # eval branch (normalize -> NT matmul -> row max/argmax -> mean)
    tasks, sim = mod.forward(feats, training=False)
    jax.block_until_ready((tasks, sim))

    # training branch (matvec with single pre-normalized key)
    tasks_tr, sim_tr = mod.forward(feats, training=True)
    jax.block_until_ready((tasks_tr, sim_tr))

    # check against pure-JAX references
    ref_tasks, ref_sim = _ref_eval(feats, mod.keys[: mod.t + 1])
    assert tasks.shape == (batch,) and tasks.dtype == jnp.int32
    assert jnp.all(tasks == ref_tasks)
    assert jnp.allclose(sim, ref_sim, atol=1e-5, rtol=1e-5)

    ref_sim_tr = _ref_train(feats, mod.keys[mod.t][None, :])
    assert tasks_tr.shape == (batch,) and jnp.all(tasks_tr == 0)
    assert jnp.allclose(sim_tr, ref_sim_tr, atol=1e-5, rtol=1e-5)

    print("KERNEL_OK")
</pallas_src>

<mosaic_0001>
module attributes {stable_mosaic.version = 11 : i64} {
  func.func @_eval_kernel(%arg0: i32, %arg1: memref<128x32xf32, #tpu.memory_space<vmem>>, %arg2: memref<3x32xf32, #tpu.memory_space<vmem>>, %arg3: memref<1x128xi32, #tpu.memory_space<vmem>>, %arg4: memref<1x128xf32, #tpu.memory_space<vmem>>) attributes {dimension_semantics = [#tpu.dimension_semantics<parallel>], iteration_bounds = array<i64: 1>, scalar_prefetch = 0 : i64, scratch_operands = 0 : i64, tpu.core_type = #tpu.core_type<tc>, window_params = [{transform_indices = @transform_0, window_bounds = array<i64: 128, 32>}, {pipeline_mode = #tpu.pipeline_mode<synchronous>, transform_indices = @transform_1, window_bounds = array<i64: 3, 32>}, {transform_indices = @transform_2, window_bounds = array<i64: 1, 128>}, {transform_indices = @transform_3, window_bounds = array<i64: 1, 128>}]} {
    %c0 = arith.constant 0 : index
    %c0_0 = arith.constant 0 : index
    %0 = vector.load %arg1[%c0, %c0_0] : memref<128x32xf32, #tpu.memory_space<vmem>>, vector<128x32xf32>
    %c0_1 = arith.constant 0 : index
    %c0_2 = arith.constant 0 : index
    %1 = vector.load %arg2[%c0_1, %c0_2] : memref<3x32xf32, #tpu.memory_space<vmem>>, vector<3x32xf32>
    %2 = arith.mulf %0, %0 : vector<128x32xf32>
    %cst = arith.constant dense<0.000000e+00> : vector<128xf32>
    %3 = vector.multi_reduction <add>, %2, %cst [1] : vector<128x32xf32> to vector<128xf32>
    %4 = vector.shape_cast %3 : vector<128xf32> to vector<128x1xf32>
    %cst_3 = arith.constant 1.000000e-24 : f32
    %5 = vector.broadcast %cst_3 : f32 to vector<128x1xf32>
    %6 = arith.maximumf %4, %5 : vector<128x1xf32>
    %7 = math.rsqrt %6 : vector<128x1xf32>
    %8 = vector.broadcast %7 : vector<128x1xf32> to vector<128x32xf32>
    %9 = arith.mulf %0, %8 : vector<128x32xf32>
    %cst_4 = arith.constant dense<0.000000e+00> : vector<128x3xf32>
    %10 = tpu.matmul %9, %1, %cst_4 {dimension_numbers = #tpu.dot_dimension_numbers<[1], [1], [0], [0], [0, 0, 1, 0], [], []>} : vector<128x32xf32>, vector<3x32xf32>, vector<128x3xf32> -> vector<128x3xf32>
    %cst_5 = arith.constant dense<0xFF800000> : vector<128xf32>
    %11 = vector.multi_reduction <maximumf>, %10, %cst_5 [1] : vector<128x3xf32> to vector<128xf32>
    %12 = vector.shape_cast %11 : vector<128xf32> to vector<128x1xf32>
    %13 = tpu.iota {dimensions = array<i32: 1>} : vector<128x3xi32>
    %14 = vector.broadcast %12 : vector<128x1xf32> to vector<128x3xf32>
    %15 = arith.cmpf oeq, %10, %14 : vector<128x3xf32>
    %c3_i32 = arith.constant 3 : i32
    %16 = vector.broadcast %c3_i32 : i32 to vector<128x3xi32>
    %17 = arith.select %15, %13, %16 : vector<128x3xi1>, vector<128x3xi32>
    %cst_6 = arith.constant dense<2147483647> : vector<128xi32>
    %18 = vector.multi_reduction <minsi>, %17, %cst_6 [1] : vector<128x3xi32> to vector<128xi32>
    %19 = vector.shape_cast %18 : vector<128xi32> to vector<1x128xi32>
    %c0_7 = arith.constant 0 : index
    %c0_8 = arith.constant 0 : index
    %20 = vector.load %arg3[%c0_7, %c0_8] : memref<1x128xi32, #tpu.memory_space<vmem>>, vector<1x128xi32>
    tpu.vector_store %arg3[%c0_7, %c0_8], %19 {strides = array<i32>} : memref<1x128xi32, #tpu.memory_space<vmem>>, vector<1x128xi32>,
    %21 = vector.shape_cast %12 : vector<128x1xf32> to vector<128xf32>
    %22 = vector.shape_cast %21 : vector<128xf32> to vector<1x128xf32>
    %c0_9 = arith.constant 0 : index
    %c0_10 = arith.constant 0 : index
    %23 = vector.load %arg4[%c0_9, %c0_10] : memref<1x128xf32, #tpu.memory_space<vmem>>, vector<1x128xf32>
    tpu.vector_store %arg4[%c0_9, %c0_10], %22 {strides = array<i32>} : memref<1x128xf32, #tpu.memory_space<vmem>>, vector<1x128xf32>,
    return
  }
  func.func @transform_0(%arg0: i32) -> (i32, i32) {
    %c0_i32 = arith.constant 0 : i32
    %c0_i32_0 = arith.constant 0 : i32
    return %arg0, %c0_i32 : i32, i32
  }
  func.func @transform_1(%arg0: i32) -> (i32, i32) {
    %c0_i32 = arith.constant 0 : i32
    %c0_i32_0 = arith.constant 0 : i32
    %c0_i32_1 = arith.constant 0 : i32
    return %c0_i32, %c0_i32_0 : i32, i32
  }
  func.func @transform_2(%arg0: i32) -> (i32, i32) {
    %c0_i32 = arith.constant 0 : i32
    %c0_i32_0 = arith.constant 0 : i32
    return %c0_i32, %arg0 : i32, i32
  }
  func.func @transform_3(%arg0: i32) -> (i32, i32) {
    %c0_i32 = arith.constant 0 : i32
    %c0_i32_0 = arith.constant 0 : i32
    return %c0_i32, %arg0 : i32, i32
  }
}

</mosaic_0001>

<llo_original>
// kernel: tpu_custom_call.1
$region0: #{tpu_custom_call.1}
  #allocation0 [shape = 'u32[]', space=smem, size = 0x4, offset = 0x4, fixed_abs, tag = 'smem constant byte address 0x4 - core index']
  #allocation1 [shape = 'u32[144,128]{1,0:T(1,128)}', space=vmem, size = 0x12000, scoped, tag = 'internal scratch']
  %s0 = inlined_call_operand.vmem [shape: f32[128,32], index: 0, kind: input, shape index: {}]
  %s1 = inlined_call_operand.vmem [shape: f32[3,32], index: 1, kind: input, shape index: {}]
  %s2 = inlined_call_operand.hbm [shape: s32[1,128], index: 2, kind: output, shape index: {0}]
  %s3 = inlined_call_operand.hbm [shape: f32[1,128], index: 3, kind: output, shape index: {1}]
  %4 = xla_tuple %s2, %s3
  %s5 = sld [smem:[#allocation0]]
  $region26: #{tpu_custom_call.1} parent=0
    _
  %s7 = ssub.s32 1, %s5
  %s8 = scalar_select 0, %s7, %s5
  $region1: #{tpu_custom_call.1} parent=0
    #allocation2 [shape = 'u8[512]{0}', space=vmem, size = 0x400, scoped, tag = 'output window, operand 0, single buffered']
    #allocation3 [shape = 's32[1]{0}', space=sflag, size = 0x4, scoped, tag = 'scoped memory for tpu_custom_call.1']
    #allocation4 [shape = 'u8[512]{0}', space=vmem, size = 0x400, scoped, tag = 'output window, operand 1, single buffered']
    #allocation5 [shape = 's32[1]{0}', space=sflag, size = 0x4, scoped, tag = 'scoped memory for tpu_custom_call.1']
    %9 = vsyncpa [#allocation3], 0
    %10 = vsyncpa [#allocation5], 0
    // Predicated region
    $region2: #{tpu_custom_call.1} parent=1 // pred_check
      _
    $region3: #{tpu_custom_call.1} parent=1 // pred_check_branch
      %12 = sbr.rel (0) target = $region5
    $region4: #{tpu_custom_call.1} parent=1 // pred_region
      _
    $region5: #{tpu_custom_call.1} parent=1 // pred_fallthru
      _
    // Predicated region
    $region6: #{tpu_custom_call.1} parent=1 // pred_check
      _
    $region7: #{tpu_custom_call.1} parent=1 // pred_check_branch
      %14 = sbr.rel (0) target = $region9
    $region8: #{tpu_custom_call.1} parent=1 // pred_region
      _
    $region9: #{tpu_custom_call.1} parent=1 // pred_fallthru
      _
    %v15 = vld [vmem:[%s0] sm:$0xff]
    %v16 = vld [vmem:[%s0 + $0x8] sm:$0xff]
    %v17 = vld [vmem:[%s0 + $0x10] sm:$0xff]
    %v18 = vld [vmem:[%s0 + $0x18] sm:$0xff]
    %v19 = vld [vmem:[%s0 + $0x20] sm:$0xff]
    %v20 = vld [vmem:[%s0 + $0x28] sm:$0xff]
    %v21 = vld [vmem:[%s0 + $0x30] sm:$0xff]
    %v22 = vld [vmem:[%s0 + $0x38] sm:$0xff]
    %v23 = vld [vmem:[%s0 + $0x40] sm:$0xff]
    %v24 = vld [vmem:[%s0 + $0x48] sm:$0xff]
    %v25 = vld [vmem:[%s0 + $0x50] sm:$0xff]
    %v26 = vld [vmem:[%s0 + $0x58] sm:$0xff]
    %v27 = vld [vmem:[%s0 + $0x60] sm:$0xff]
    %v28 = vld [vmem:[%s0 + $0x68] sm:$0xff]
    %v29 = vld [vmem:[%s0 + $0x70] sm:$0xff]
    %v30 = vld [vmem:[%s0 + $0x78] sm:$0xff]
    %v31 = vld [vmem:[%s1] sm:$0x7]
    %v32 = vmul.f32 %v15, %v15
    %v33 = vmul.f32 %v16, %v16
    %v34 = vmul.f32 %v17, %v17
    %v35 = vmul.f32 %v18, %v18
    %v36 = vmul.f32 %v19, %v19
    %v37 = vmul.f32 %v20, %v20
    %v38 = vmul.f32 %v21, %v21
    %v39 = vmul.f32 %v22, %v22
    %v40 = vmul.f32 %v23, %v23
    %v41 = vmul.f32 %v24, %v24
    %v42 = vmul.f32 %v25, %v25
    %v43 = vmul.f32 %v26, %v26
    %v44 = vmul.f32 %v27, %v27
    %v45 = vmul.f32 %v28, %v28
    %v46 = vmul.f32 %v29, %v29
    %v47 = vmul.f32 %v30, %v30
    %vm48 = vcmask 261120
    %v49 = vsel %vm48, %v32, 0.0
    %50 = vadd.xlane.f32.xlu0 %v49
    %v51 = vpop.xlane.xlu0 %50
    %v52 = vsel %vm48, %v33, 0.0
    %53 = vadd.xlane.f32.xlu0 %v52
    %v54 = vpop.xlane.xlu0 %53
    %v55 = vsel %vm48, %v34, 0.0
    %56 = vadd.xlane.f32.xlu0 %v55
    %v57 = vpop.xlane.xlu0 %56
    %v58 = vsel %vm48, %v35, 0.0
    %59 = vadd.xlane.f32.xlu0 %v58
    %v60 = vpop.xlane.xlu0 %59
    %v61 = vsel %vm48, %v36, 0.0
    %62 = vadd.xlane.f32.xlu0 %v61
    %v63 = vpop.xlane.xlu0 %62
    %v64 = vsel %vm48, %v37, 0.0
    %65 = vadd.xlane.f32.xlu0 %v64
    %v66 = vpop.xlane.xlu0 %65
    %v67 = vsel %vm48, %v38, 0.0
    %68 = vadd.xlane.f32.xlu0 %v67
    %v69 = vpop.xlane.xlu0 %68
    %v70 = vsel %vm48, %v39, 0.0
    %71 = vadd.xlane.f32.xlu0 %v70
    %v72 = vpop.xlane.xlu0 %71
    %v73 = vsel %vm48, %v40, 0.0
    %74 = vadd.xlane.f32.xlu0 %v73
    %v75 = vpop.xlane.xlu0 %74
    %v76 = vsel %vm48, %v41, 0.0
    %77 = vadd.xlane.f32.xlu0 %v76
    %v78 = vpop.xlane.xlu0 %77
    %v79 = vsel %vm48, %v42, 0.0
    %80 = vadd.xlane.f32.xlu0 %v79
    %v81 = vpop.xlane.xlu0 %80
    %v82 = vsel %vm48, %v43, 0.0
    %83 = vadd.xlane.f32.xlu0 %v82
    %v84 = vpop.xlane.xlu0 %83
    %v85 = vsel %vm48, %v44, 0.0
    %86 = vadd.xlane.f32.xlu0 %v85
    %v87 = vpop.xlane.xlu0 %86
    %v88 = vsel %vm48, %v45, 0.0
    %89 = vadd.xlane.f32.xlu0 %v88
    %v90 = vpop.xlane.xlu0 %89
    %v91 = vsel %vm48, %v46, 0.0
    %92 = vadd.xlane.f32.xlu0 %v91
    %v93 = vpop.xlane.xlu0 %92
    %v94 = vsel %vm48, %v47, 0.0
    %95 = vadd.xlane.f32.xlu0 %v94
    %v96 = vpop.xlane.xlu0 %95
    %v97 = vmax.f32 %v51, 1e-24
    %v98 = vmax.f32 %v54, 1e-24
    %v99 = vmax.f32 %v57, 1e-24
    %v100 = vmax.f32 %v60, 1e-24
    %v101 = vmax.f32 %v63, 1e-24
    %v102 = vmax.f32 %v66, 1e-24
    %v103 = vmax.f32 %v69, 1e-24
    %v104 = vmax.f32 %v72, 1e-24
    %v105 = vmax.f32 %v75, 1e-24
    %v106 = vmax.f32 %v78, 1e-24
    %v107 = vmax.f32 %v81, 1e-24
    %v108 = vmax.f32 %v84, 1e-24
    %v109 = vmax.f32 %v87, 1e-24
    %v110 = vmax.f32 %v90, 1e-24
    %v111 = vmax.f32 %v93, 1e-24
    %v112 = vmax.f32 %v96, 1e-24
    %v113 = vrsqrt.pop %v97
    %v114 = vrsqrt.pop %v98
    %v115 = vrsqrt.pop %v99
    %v116 = vrsqrt.pop %v100
    %v117 = vrsqrt.pop %v101
    %v118 = vrsqrt.pop %v102
    %v119 = vrsqrt.pop %v103
    %v120 = vrsqrt.pop %v104
    %v121 = vrsqrt.pop %v105
    %v122 = vrsqrt.pop %v106
    %v123 = vrsqrt.pop %v107
    %v124 = vrsqrt.pop %v108
    %v125 = vrsqrt.pop %v109
    %v126 = vrsqrt.pop %v110
    %v127 = vrsqrt.pop %v111
    %v128 = vrsqrt.pop %v112
    %v129 = vmul.f32 %v15, %v113
    %v130 = vmul.f32 %v16, %v114
    %v131 = vmul.f32 %v17, %v115
    %v132 = vmul.f32 %v18, %v116
    %v133 = vmul.f32 %v19, %v117
    %v134 = vmul.f32 %v20, %v118
    %v135 = vmul.f32 %v21, %v119
    %v136 = vmul.f32 %v22, %v120
    %v137 = vmul.f32 %v23, %v121
    %v138 = vmul.f32 %v24, %v122
    %v139 = vmul.f32 %v25, %v123
    %v140 = vmul.f32 %v26, %v124
    %v141 = vmul.f32 %v27, %v125
    %v142 = vmul.f32 %v28, %v126
    %v143 = vmul.f32 %v29, %v127
    %v144 = vmul.f32 %v30, %v128
    %v146 = vsel %vm48, %v129, 0
    %v149 = vsel %vm48, %v130, 0
    %v152 = vsel %vm48, %v131, 0
    %v155 = vsel %vm48, %v132, 0
    %v158 = vsel %vm48, %v133, 0
    %v161 = vsel %vm48, %v134, 0
    %v164 = vsel %vm48, %v135, 0
    %v167 = vsel %vm48, %v136, 0
    %v170 = vsel %vm48, %v137, 0
    %v173 = vsel %vm48, %v138, 0
    %v176 = vsel %vm48, %v139, 0
    %v179 = vsel %vm48, %v140, 0
    %v182 = vsel %vm48, %v141, 0
    %v185 = vsel %vm48, %v142, 0
    %v188 = vsel %vm48, %v143, 0
    %v191 = vsel %vm48, %v144, 0
    %v194 = vsel %vm48, %v31, 0
    %196 = vmatprep.subr.mxu0 0.0
    %197 = vmatpush1.xpose.msra.mxu0 %v194
    %198 = vmatprep.subr.mxu0 0.0
    %199 = vmatpush1.xpose.msra.mxu0 0.0
    %200 = vmatprep.subr.mxu0 0.0
    %201 = vmatpush1.xpose.msra.mxu0 0.0
    %202 = vmatprep.subr.mxu0 0.0
    %203 = vmatpush1.xpose.msra.mxu0 0.0
    %204 = vmatprep.subr.mxu0 0.0
    %205 = vmatpush1.xpose.msra.mxu0 0.0
    %206 = vmatprep.subr.mxu0 0.0
    %207 = vmatpush1.xpose.msra.mxu0 0.0
    %208 = vmatprep.subr.mxu0 0.0
    %209 = vmatpush1.xpose.msra.mxu0 0.0
    %210 = vmatprep.subr.mxu0 0.0
    %211 = vmatpush1.xpose.msra.mxu0 0.0
    %212 = vmatprep.subr.mxu0 0.0
    %213 = vmatpush1.xpose.msra.mxu0 0.0
    %214 = vmatprep.subr.mxu0 0.0
    %215 = vmatpush1.xpose.msra.mxu0 0.0
    %216 = vmatprep.subr.mxu0 0.0
    %217 = vmatpush1.xpose.msra.mxu0 0.0
    %218 = vmatprep.subr.mxu0 0.0
    %219 = vmatpush1.xpose.msra.mxu0 0.0
    %220 = vmatprep.subr.mxu0 0.0
    %221 = vmatpush1.xpose.msra.mxu0 0.0
    %222 = vmatprep.subr.mxu0 0.0
    %223 = vmatpush1.xpose.msra.mxu0 0.0
    %224 = vmatprep.subr.mxu0 0.0
    %225 = vmatpush1.xpose.msra.mxu0 0.0
    %226 = vmatprep.subr.mxu0 0.0
    %227 = vmatpush1.xpose.msra.mxu0 0.0
    %228 = vmatprep.subr.mxu0 0.0
    %229 = vmatpush1.xpose.msra.mxu0 0.0
    %230 = vmatprep.subr.mxu0 0.0
    %231 = vmatpush1.xpose.msra.mxu0 0.0
    %232 = vmatprep.subr.mxu0 0.0
    %233 = vmatpush1.xpose.msra.mxu0 0.0
    %234 = vmatprep.subr.mxu0 0.0
    %235 = vmatpush1.xpose.msra.mxu0 0.0
    %236 = vmatprep.subr.mxu0 0.0
    %237 = vmatpush1.xpose.msra.mxu0 0.0
    %238 = vmatprep.subr.mxu0 0.0
    %239 = vmatpush1.xpose.msra.mxu0 0.0
    %240 = vmatprep.subr.mxu0 0.0
    %241 = vmatpush1.xpose.msra.mxu0 0.0
    %242 = vmatprep.subr.mxu0 0.0
    %243 = vmatpush1.xpose.msra.mxu0 0.0
    %244 = vmatprep.subr.mxu0 0.0
    %245 = vmatpush1.xpose.msra.mxu0 0.0
    %246 = vmatprep.subr.mxu0 0.0
    %247 = vmatpush1.xpose.msra.mxu0 0.0
    %248 = vmatprep.subr.mxu0 0.0
    %249 = vmatpush1.xpose.msra.mxu0 0.0
    %250 = vmatprep.subr.mxu0 0.0
    %251 = vmatpush1.xpose.msra.mxu0 0.0
    %252 = vmatprep.subr.mxu0 0.0
    %253 = vmatpush1.xpose.msra.mxu0 0.0
    %254 = vmatprep.subr.mxu0 0.0
    %255 = vmatpush1.xpose.msra.mxu0 0.0
    %256 = vmatprep.subr.mxu0 0.0
    %257 = vmatpush1.xpose.msra.mxu0 0.0
    %258 = vmatprep.subr.mxu0 0.0
    %259 = vmatpush1.xpose.msra.mxu0 0.0
    %260 = vmatprep.mubr.f32.mxu0 0.0
    %261 = vmatmul.mubr.f32.gmra.mrb[0].mxu0 %v146
    %v262 = vpop.f32.mrb[0].mxu0
    %v263 = vadd.f32 0.0, %v262
    %v264 = vpop.f32.mrb[0].mxu0
    %265 = vmatprep.mubr.f32.mxu0 0.0
    %266 = vmatmul.mubr.f32.gmra.mrb[0].mxu0 %v149
    %v267 = vpop.f32.mrb[0].mxu0
    %v268 = vadd.f32 0.0, %v267
    %v269 = vpop.f32.mrb[0].mxu0
    %270 = vmatprep.mubr.f32.mxu0 0.0
    %271 = vmatmul.mubr.f32.gmra.mrb[0].mxu0 %v152
    %v272 = vpop.f32.mrb[0].mxu0
    %v273 = vadd.f32 0.0, %v272
    %v274 = vpop.f32.mrb[0].mxu0
    %275 = vmatprep.mubr.f32.mxu0 0.0
    %276 = vmatmul.mubr.f32.gmra.mrb[0].mxu0 %v155
    %v277 = vpop.f32.mrb[0].mxu0
    %v278 = vadd.f32 0.0, %v277
    %v279 = vpop.f32.mrb[0].mxu0
    %280 = vmatprep.mubr.f32.mxu0 0.0
    %281 = vmatmul.mubr.f32.gmra.mrb[0].mxu0 %v158
    %v282 = vpop.f32.mrb[0].mxu0
    %v283 = vadd.f32 0.0, %v282
    %v284 = vpop.f32.mrb[0].mxu0
    %285 = vmatprep.mubr.f32.mxu0 0.0
    %286 = vmatmul.mubr.f32.gmra.mrb[0].mxu0 %v161
    %v287 = vpop.f32.mrb[0].mxu0
    %v288 = vadd.f32 0.0, %v287
    %v289 = vpop.f32.mrb[0].mxu0
    %290 = vmatprep.mubr.f32.mxu0 0.0
    %291 = vmatmul.mubr.f32.gmra.mrb[0].mxu0 %v164
    %v292 = vpop.f32.mrb[0].mxu0
    %v293 = vadd.f32 0.0, %v292
    %v294 = vpop.f32.mrb[0].mxu0
    %295 = vmatprep.mubr.f32.mxu0 0.0
    %296 = vmatmul.mubr.f32.gmra.mrb[0].mxu0 %v167
    %v297 = vpop.f32.mrb[0].mxu0
    %v298 = vadd.f32 0.0, %v297
    %v299 = vpop.f32.mrb[0].mxu0
    %300 = vmatprep.mubr.f32.mxu0 0.0
    %301 = vmatmul.mubr.f32.gmra.mrb[0].mxu0 %v170
    %v302 = vpop.f32.mrb[0].mxu0
    %v303 = vadd.f32 0.0, %v302
    %v304 = vpop.f32.mrb[0].mxu0
    %305 = vmatprep.mubr.f32.mxu0 0.0
    %306 = vmatmul.mubr.f32.gmra.mrb[0].mxu0 %v173
    %v307 = vpop.f32.mrb[0].mxu0
    %v308 = vadd.f32 0.0, %v307
    %v309 = vpop.f32.mrb[0].mxu0
    %310 = vmatprep.mubr.f32.mxu0 0.0
    %311 = vmatmul.mubr.f32.gmra.mrb[0].mxu0 %v176
    %v312 = vpop.f32.mrb[0].mxu0
    %v313 = vadd.f32 0.0, %v312
    %v314 = vpop.f32.mrb[0].mxu0
    %315 = vmatprep.mubr.f32.mxu0 0.0
    %316 = vmatmul.mubr.f32.gmra.mrb[0].mxu0 %v179
    %v317 = vpop.f32.mrb[0].mxu0
    %v318 = vadd.f32 0.0, %v317
    %v319 = vpop.f32.mrb[0].mxu0
    %320 = vmatprep.mubr.f32.mxu0 0.0
    %321 = vmatmul.mubr.f32.gmra.mrb[0].mxu0 %v182
    %v322 = vpop.f32.mrb[0].mxu0
    %v323 = vadd.f32 0.0, %v322
    %v324 = vpop.f32.mrb[0].mxu0
    %325 = vmatprep.mubr.f32.mxu0 0.0
    %326 = vmatmul.mubr.f32.gmra.mrb[0].mxu0 %v185
    %v327 = vpop.f32.mrb[0].mxu0
    %v328 = vadd.f32 0.0, %v327
    %v329 = vpop.f32.mrb[0].mxu0
    %330 = vmatprep.mubr.f32.mxu0 0.0
    %331 = vmatmul.mubr.f32.gmra.mrb[0].mxu0 %v188
    %v332 = vpop.f32.mrb[0].mxu0
    %v333 = vadd.f32 0.0, %v332
    %v334 = vpop.f32.mrb[0].mxu0
    %335 = vmatprep.mubr.f32.mxu0 0.0
    %336 = vmatmul.mubr.f32.gmra.mrb[0].mxu0 %v191
    %v337 = vpop.f32.mrb[0].mxu0
    %v338 = vadd.f32 0.0, %v337
    %v339 = vpop.f32.mrb[0].mxu0
    %340 = vdwg.mxu0
    %vm341 = vcmask 23552
    %v342 = vsel %vm341, %v263, -inf
    %343 = vmax.xlane.f32.xlu0 %v342
    %v344 = vpop.xlane.xlu0 %343
    %v345 = vsel %vm341, %v268, -inf
    %346 = vmax.xlane.f32.xlu0 %v345
    %v347 = vpop.xlane.xlu0 %346
    %v348 = vsel %vm341, %v273, -inf
    %349 = vmax.xlane.f32.xlu0 %v348
    %v350 = vpop.xlane.xlu0 %349
    %v351 = vsel %vm341, %v278, -inf
    %352 = vmax.xlane.f32.xlu0 %v351
    %v353 = vpop.xlane.xlu0 %352
    %v354 = vsel %vm341, %v283, -inf
    %355 = vmax.xlane.f32.xlu0 %v354
    %v356 = vpop.xlane.xlu0 %355
    %v357 = vsel %vm341, %v288, -inf
    %358 = vmax.xlane.f32.xlu0 %v357
    %v359 = vpop.xlane.xlu0 %358
    %v360 = vsel %vm341, %v293, -inf
    %361 = vmax.xlane.f32.xlu0 %v360
    %v362 = vpop.xlane.xlu0 %361
    %v363 = vsel %vm341, %v298, -inf
    %364 = vmax.xlane.f32.xlu0 %v363
    %v365 = vpop.xlane.xlu0 %364
    %v366 = vsel %vm341, %v303, -inf
    %367 = vmax.xlane.f32.xlu0 %v366
    %v368 = vpop.xlane.xlu0 %367
    %v369 = vsel %vm341, %v308, -inf
    %370 = vmax.xlane.f32.xlu0 %v369
    %v371 = vpop.xlane.xlu0 %370
    %v372 = vsel %vm341, %v313, -inf
    %373 = vmax.xlane.f32.xlu0 %v372
    %v374 = vpop.xlane.xlu0 %373
    %v375 = vsel %vm341, %v318, -inf
    %376 = vmax.xlane.f32.xlu0 %v375
    %v377 = vpop.xlane.xlu0 %376
    %v378 = vsel %vm341, %v323, -inf
    %379 = vmax.xlane.f32.xlu0 %v378
    %v380 = vpop.xlane.xlu0 %379
    %v381 = vsel %vm341, %v328, -inf
    %382 = vmax.xlane.f32.xlu0 %v381
    %v383 = vpop.xlane.xlu0 %382
    %v384 = vsel %vm341, %v333, -inf
    %385 = vmax.xlane.f32.xlu0 %v384
    %v386 = vpop.xlane.xlu0 %385
    %v387 = vsel %vm341, %v338, -inf
    %388 = vmax.xlane.f32.xlu0 %v387
    %v389 = vpop.xlane.xlu0 %388
    %v390 = vlaneseq
    %v391 = vand.u32 %v390, 127
    %vm392 = vcmp.eq.f32.partialorder %v263, %v344
    %vm393 = vcmp.eq.f32.partialorder %v268, %v347
    %vm394 = vcmp.eq.f32.partialorder %v273, %v350
    %vm395 = vcmp.eq.f32.partialorder %v278, %v353
    %vm396 = vcmp.eq.f32.partialorder %v283, %v356
    %vm397 = vcmp.eq.f32.partialorder %v288, %v359
    %vm398 = vcmp.eq.f32.partialorder %v293, %v362
    %vm399 = vcmp.eq.f32.partialorder %v298, %v365
    %vm400 = vcmp.eq.f32.partialorder %v303, %v368
    %vm401 = vcmp.eq.f32.partialorder %v308, %v371
    %vm402 = vcmp.eq.f32.partialorder %v313, %v374
    %vm403 = vcmp.eq.f32.partialorder %v318, %v377
    %vm404 = vcmp.eq.f32.partialorder %v323, %v380
    %vm405 = vcmp.eq.f32.partialorder %v328, %v383
    %vm406 = vcmp.eq.f32.partialorder %v333, %v386
    %vm407 = vcmp.eq.f32.partialorder %v338, %v389
    %v408 = vsel %vm392, %v391, 3
    %v409 = vsel %vm393, %v391, 3
    %v410 = vsel %vm394, %v391, 3
    %v411 = vsel %vm395, %v391, 3
    %v412 = vsel %vm396, %v391, 3
    %v413 = vsel %vm397, %v391, 3
    %v414 = vsel %vm398, %v391, 3
    %v415 = vsel %vm399, %v391, 3
    %v416 = vsel %vm400, %v391, 3
    %v417 = vsel %vm401, %v391, 3
    %v418 = vsel %vm402, %v391, 3
    %v419 = vsel %vm403, %v391, 3
    %v420 = vsel %vm404, %v391, 3
    %v421 = vsel %vm405, %v391, 3
    %v422 = vsel %vm406, %v391, 3
    %v423 = vsel %vm407, %v391, 3
    %v424 = vsel %vm341, %v408, 2147483647
    %v425 = vand.u32 %v424, 65535
    %v426 = vshra.s32 %v424, 16
    %v427 = vcvt.s32.f32 %v425
    %v428 = vcvt.s32.f32 %v426
    %429 = vmin.xlane.f32.xlu0 %v428
    %v430 = vpop.xlane.xlu0 %429
    %vm431 = vcmp.eq.f32.partialorder %v428, %v430
    %v432 = vsel %vm431, %v427, inf
    %433 = vmin.xlane.f32.xlu0 %v432
    %v434 = vpop.xlane.xlu0 %433
    %v435 = vcvt.f32.s32 %v434
    %v436 = vcvt.f32.s32 %v430
    %v437 = vshll.u32 %v436, 16
    %v438 = vadd.s32 %v437, %v435
    %v439 = vsel %vm341, %v409, 2147483647
    %v440 = vand.u32 %v439, 65535
    %v441 = vshra.s32 %v439, 16
    %v442 = vcvt.s32.f32 %v440
    %v443 = vcvt.s32.f32 %v441
    %444 = vmin.xlane.f32.xlu0 %v443
    %v445 = vpop.xlane.xlu0 %444
    %vm446 = vcmp.eq.f32.partialorder %v443, %v445
    %v447 = vsel %vm446, %v442, inf
    %448 = vmin.xlane.f32.xlu0 %v447
    %v449 = vpop.xlane.xlu0 %448
    %v450 = vcvt.f32.s32 %v449
    %v451 = vcvt.f32.s32 %v445
    %v452 = vshll.u32 %v451, 16
    %v453 = vadd.s32 %v452, %v450
    %v454 = vsel %vm341, %v410, 2147483647
    %v455 = vand.u32 %v454, 65535
    %v456 = vshra.s32 %v454, 16
    %v457 = vcvt.s32.f32 %v455
    %v458 = vcvt.s32.f32 %v456
    %459 = vmin.xlane.f32.xlu0 %v458
    %v460 = vpop.xlane.xlu0 %459
    %vm461 = vcmp.eq.f32.partialorder %v458, %v460
    %v462 = vsel %vm461, %v457, inf
    %463 = vmin.xlane.f32.xlu0 %v462
    %v464 = vpop.xlane.xlu0 %463
    %v465 = vcvt.f32.s32 %v464
    %v466 = vcvt.f32.s32 %v460
    %v467 = vshll.u32 %v466, 16
    %v468 = vadd.s32 %v467, %v465
    %v469 = vsel %vm341, %v411, 2147483647
    %v470 = vand.u32 %v469, 65535
    %v471 = vshra.s32 %v469, 16
    %v472 = vcvt.s32.f32 %v470
    %v473 = vcvt.s32.f32 %v471
    %474 = vmin.xlane.f32.xlu0 %v473
    %v475 = vpop.xlane.xlu0 %474
    %vm476 = vcmp.eq.f32.partialorder %v473, %v475
    %v477 = vsel %vm476, %v472, inf
    %478 = vmin.xlane.f32.xlu0 %v477
    %v479 = vpop.xlane.xlu0 %478
    %v480 = vcvt.f32.s32 %v479
    %v481 = vcvt.f32.s32 %v475
    %v482 = vshll.u32 %v481, 16
    %v483 = vadd.s32 %v482, %v480
    %v484 = vsel %vm341, %v412, 2147483647
    %v485 = vand.u32 %v484, 65535
    %v486 = vshra.s32 %v484, 16
    %v487 = vcvt.s32.f32 %v485
    %v488 = vcvt.s32.f32 %v486
    %489 = vmin.xlane.f32.xlu0 %v488
    %v490 = vpop.xlane.xlu0 %489
    %vm491 = vcmp.eq.f32.partialorder %v488, %v490
    %v492 = vsel %vm491, %v487, inf
    %493 = vmin.xlane.f32.xlu0 %v492
    %v494 = vpop.xlane.xlu0 %493
    %v495 = vcvt.f32.s32 %v494
    %v496 = vcvt.f32.s32 %v490
    %v497 = vshll.u32 %v496, 16
    %v498 = vadd.s32 %v497, %v495
    %v499 = vsel %vm341, %v413, 2147483647
    %v500 = vand.u32 %v499, 65535
    %v501 = vshra.s32 %v499, 16
    %v502 = vcvt.s32.f32 %v500
    %v503 = vcvt.s32.f32 %v501
    %504 = vmin.xlane.f32.xlu0 %v503
    %v505 = vpop.xlane.xlu0 %504
    %vm506 = vcmp.eq.f32.partialorder %v503, %v505
    %v507 = vsel %vm506, %v502, inf
    %508 = vmin.xlane.f32.xlu0 %v507
    %v509 = vpop.xlane.xlu0 %508
    %v510 = vcvt.f32.s32 %v509
    %v511 = vcvt.f32.s32 %v505
    %v512 = vshll.u32 %v511, 16
    %v513 = vadd.s32 %v512, %v510
    %v514 = vsel %vm341, %v414, 2147483647
    %v515 = vand.u32 %v514, 65535
    %v516 = vshra.s32 %v514, 16
    %v517 = vcvt.s32.f32 %v515
    %v518 = vcvt.s32.f32 %v516
    %519 = vmin.xlane.f32.xlu0 %v518
    %v520 = vpop.xlane.xlu0 %519
    %vm521 = vcmp.eq.f32.partialorder %v518, %v520
    %v522 = vsel %vm521, %v517, inf
    %523 = vmin.xlane.f32.xlu0 %v522
    %v524 = vpop.xlane.xlu0 %523
    %v525 = vcvt.f32.s32 %v524
    %v526 = vcvt.f32.s32 %v520
    %v527 = vshll.u32 %v526, 16
    %v528 = vadd.s32 %v527, %v525
    %v529 = vsel %vm341, %v415, 2147483647
    %v530 = vand.u32 %v529, 65535
    %v531 = vshra.s32 %v529, 16
    %v532 = vcvt.s32.f32 %v530
    %v533 = vcvt.s32.f32 %v531
    %534 = vmin.xlane.f32.xlu0 %v533
    %v535 = vpop.xlane.xlu0 %534
    %vm536 = vcmp.eq.f32.partialorder %v533, %v535
    %v537 = vsel %vm536, %v532, inf
    %538 = vmin.xlane.f32.xlu0 %v537
    %v539 = vpop.xlane.xlu0 %538
    %v540 = vcvt.f32.s32 %v539
    %v541 = vcvt.f32.s32 %v535
    %v542 = vshll.u32 %v541, 16
    %v543 = vadd.s32 %v542, %v540
    %v544 = vsel %vm341, %v416, 2147483647
    %v545 = vand.u32 %v544, 65535
    %v546 = vshra.s32 %v544, 16
    %v547 = vcvt.s32.f32 %v545
    %v548 = vcvt.s32.f32 %v546
    %549 = vmin.xlane.f32.xlu0 %v548
    %v550 = vpop.xlane.xlu0 %549
    %vm551 = vcmp.eq.f32.partialorder %v548, %v550
    %v552 = vsel %vm551, %v547, inf
    %553 = vmin.xlane.f32.xlu0 %v552
    %v554 = vpop.xlane.xlu0 %553
    %v555 = vcvt.f32.s32 %v554
    %v556 = vcvt.f32.s32 %v550
    %v557 = vshll.u32 %v556, 16
    %v558 = vadd.s32 %v557, %v555
    %v559 = vsel %vm341, %v417, 2147483647
    %v560 = vand.u32 %v559, 65535
    %v561 = vshra.s32 %v559, 16
    %v562 = vcvt.s32.f32 %v560
    %v563 = vcvt.s32.f32 %v561
    %564 = vmin.xlane.f32.xlu0 %v563
    %v565 = vpop.xlane.xlu0 %564
    %vm566 = vcmp.eq.f32.partialorder %v563, %v565
    %v567 = vsel %vm566, %v562, inf
    %568 = vmin.xlane.f32.xlu0 %v567
    %v569 = vpop.xlane.xlu0 %568
    %v570 = vcvt.f32.s32 %v569
    %v571 = vcvt.f32.s32 %v565
    %v572 = vshll.u32 %v571, 16
    %v573 = vadd.s32 %v572, %v570
    %v574 = vsel %vm341, %v418, 2147483647
    %v575 = vand.u32 %v574, 65535
    %v576 = vshra.s32 %v574, 16
    %v577 = vcvt.s32.f32 %v575
    %v578 = vcvt.s32.f32 %v576
    %579 = vmin.xlane.f32.xlu0 %v578
    %v580 = vpop.xlane.xlu0 %579
    %vm581 = vcmp.eq.f32.partialorder %v578, %v580
    %v582 = vsel %vm581, %v577, inf
    %583 = vmin.xlane.f32.xlu0 %v582
    %v584 = vpop.xlane.xlu0 %583
    %v585 = vcvt.f32.s32 %v584
    %v586 = vcvt.f32.s32 %v580
    %v587 = vshll.u32 %v586, 16
    %v588 = vadd.s32 %v587, %v585
    %v589 = vsel %vm341, %v419, 2147483647
    %v590 = vand.u32 %v589, 65535
    %v591 = vshra.s32 %v589, 16
    %v592 = vcvt.s32.f32 %v590
    %v593 = vcvt.s32.f32 %v591
    %594 = vmin.xlane.f32.xlu0 %v593
    %v595 = vpop.xlane.xlu0 %594
    %vm596 = vcmp.eq.f32.partialorder %v593, %v595
    %v597 = vsel %vm596, %v592, inf
    %598 = vmin.xlane.f32.xlu0 %v597
    %v599 = vpop.xlane.xlu0 %598
    %v600 = vcvt.f32.s32 %v599
    %v601 = vcvt.f32.s32 %v595
    %v602 = vshll.u32 %v601, 16
    %v603 = vadd.s32 %v602, %v600
    %v604 = vsel %vm341, %v420, 2147483647
    %v605 = vand.u32 %v604, 65535
    %v606 = vshra.s32 %v604, 16
    %v607 = vcvt.s32.f32 %v605
    %v608 = vcvt.s32.f32 %v606
    %609 = vmin.xlane.f32.xlu0 %v608
    %v610 = vpop.xlane.xlu0 %609
    %vm611 = vcmp.eq.f32.partialorder %v608, %v610
    %v612 = vsel %vm611, %v607, inf
    %613 = vmin.xlane.f32.xlu0 %v612
    %v614 = vpop.xlane.xlu0 %613
    %v615 = vcvt.f32.s32 %v614
    %v616 = vcvt.f32.s32 %v610
    %v617 = vshll.u32 %v616, 16
    %v618 = vadd.s32 %v617, %v615
    %v619 = vsel %vm341, %v421, 2147483647
    %v620 = vand.u32 %v619, 65535
    %v621 = vshra.s32 %v619, 16
    %v622 = vcvt.s32.f32 %v620
    %v623 = vcvt.s32.f32 %v621
    %624 = vmin.xlane.f32.xlu0 %v623
    %v625 = vpop.xlane.xlu0 %624
    %vm626 = vcmp.eq.f32.partialorder %v623, %v625
    %v627 = vsel %vm626, %v622, inf
    %628 = vmin.xlane.f32.xlu0 %v627
    %v629 = vpop.xlane.xlu0 %628
    %v630 = vcvt.f32.s32 %v629
    %v631 = vcvt.f32.s32 %v625
    %v632 = vshll.u32 %v631, 16
    %v633 = vadd.s32 %v632, %v630
    %v634 = vsel %vm341, %v422, 2147483647
    %v635 = vand.u32 %v634, 65535
    %v636 = vshra.s32 %v634, 16
    %v637 = vcvt.s32.f32 %v635
    %v638 = vcvt.s32.f32 %v636
    %639 = vmin.xlane.f32.xlu0 %v638
    %v640 = vpop.xlane.xlu0 %639
    %vm641 = vcmp.eq.f32.partialorder %v638, %v640
    %v642 = vsel %vm641, %v637, inf
    %643 = vmin.xlane.f32.xlu0 %v642
    %v644 = vpop.xlane.xlu0 %643
    %v645 = vcvt.f32.s32 %v644
    %v646 = vcvt.f32.s32 %v640
    %v647 = vshll.u32 %v646, 16
    %v648 = vadd.s32 %v647, %v645
    %v649 = vsel %vm341, %v423, 2147483647
    %v650 = vand.u32 %v649, 65535
    %v651 = vshra.s32 %v649, 16
    %v652 = vcvt.s32.f32 %v650
    %v653 = vcvt.s32.f32 %v651
    %654 = vmin.xlane.f32.xlu0 %v653
    %v655 = vpop.xlane.xlu0 %654
    %vm656 = vcmp.eq.f32.partialorder %v653, %v655
    %v657 = vsel %vm656, %v652, inf
    %658 = vmin.xlane.f32.xlu0 %v657
    %v659 = vpop.xlane.xlu0 %658
    %v660 = vcvt.f32.s32 %v659
    %v661 = vcvt.f32.s32 %v655
    %v662 = vshll.u32 %v661, 16
    %v663 = vadd.s32 %v662, %v660
    %v664 = vlaneseq
    %v665 = vshrl.u32 %v664, 7
    %v666 = vsub.s32 %v391, %v665
    %v667 = vrot.slane %v438, %v666
    %v668 = vadd.s32 %v391, 4294967288
    %v669 = vlaneseq
    %v670 = vshrl.u32 %v669, 7
    %v671 = vsub.s32 %v668, %v670
    %v672 = vrot.slane %v453, %v671
    %vm673 = vcmask 130112
    %v674 = vsel %vm673, %v672, %v667
    %v675 = vadd.s32 %v391, 4294967280
    %v676 = vlaneseq
    %v677 = vshrl.u32 %v676, 7
    %v678 = vsub.s32 %v675, %v677
    %v679 = vrot.slane %v468, %v678
    %vm680 = vcmask 195712
    %v681 = vsel %vm680, %v679, %v674
    %v682 = vadd.s32 %v391, 4294967272
    %v683 = vlaneseq
    %v684 = vshrl.u32 %v683, 7
    %v685 = vsub.s32 %v682, %v684
    %v686 = vrot.slane %v483, %v685
    %vm687 = vcmask 261312
    %v688 = vsel %vm687, %v686, %v681
    %v689 = vadd.s32 %v391, 4294967264
    %v690 = vlaneseq
    %v691 = vshrl.u32 %v690, 7
    %v692 = vsub.s32 %v689, %v691
    %v693 = vrot.slane %v498, %v692
    %vm694 = vcmask 326912
    %v695 = vsel %vm694, %v693, %v688
    %v696 = vadd.s32 %v391, 4294967256
    %v697 = vlaneseq
    %v698 = vshrl.u32 %v697, 7
    %v699 = vsub.s32 %v696, %v698
    %v700 = vrot.slane %v513, %v699
    %vm701 = vcmask 392512
    %v702 = vsel %vm701, %v700, %v695
    %v703 = vadd.s32 %v391, 4294967248
    %v704 = vlaneseq
    %v705 = vshrl.u32 %v704, 7
    %v706 = vsub.s32 %v703, %v705
    %v707 = vrot.slane %v528, %v706
    %vm708 = vcmask 458112
    %v709 = vsel %vm708, %v707, %v702
    %v710 = vadd.s32 %v391, 4294967240
    %v711 = vlaneseq
    %v712 = vshrl.u32 %v711, 7
    %v713 = vsub.s32 %v710, %v712
    %v714 = vrot.slane %v543, %v713
    %vm715 = vcmask 523712
    %v716 = vsel %vm715, %v714, %v709
    %v717 = vadd.s32 %v391, 4294967232
    %v718 = vlaneseq
    %v719 = vshrl.u32 %v718, 7
    %v720 = vsub.s32 %v717, %v719
    %v721 = vrot.slane %v558, %v720
    %vm722 = vcmask 589312
    %v723 = vsel %vm722, %v721, %v716
    %v724 = vadd.s32 %v391, 4294967224
    %v725 = vlaneseq
    %v726 = vshrl.u32 %v725, 7
    %v727 = vsub.s32 %v724, %v726
    %v728 = vrot.slane %v573, %v727
    %vm729 = vcmask 654912
    %v730 = vsel %vm729, %v728, %v723
    %v731 = vadd.s32 %v391, 4294967216
    %v732 = vlaneseq
    %v733 = vshrl.u32 %v732, 7
    %v734 = vsub.s32 %v731, %v733
    %v735 = vrot.slane %v588, %v734
    %vm736 = vcmask 720512
    %v737 = vsel %vm736, %v735, %v730
    %v738 = vadd.s32 %v391, 4294967208
    %v739 = vlaneseq
    %v740 = vshrl.u32 %v739, 7
    %v741 = vsub.s32 %v738, %v740
    %v742 = vrot.slane %v603, %v741
    %vm743 = vcmask 786112
    %v744 = vsel %vm743, %v742, %v737
    %v745 = vadd.s32 %v391, 4294967200
    %v746 = vlaneseq
    %v747 = vshrl.u32 %v746, 7
    %v748 = vsub.s32 %v745, %v747
    %v749 = vrot.slane %v618, %v748
    %vm750 = vcmask 851712
    %v751 = vsel %vm750, %v749, %v744
    %v752 = vadd.s32 %v391, 4294967192
    %v753 = vlaneseq
    %v754 = vshrl.u32 %v753, 7
    %v755 = vsub.s32 %v752, %v754
    %v756 = vrot.slane %v633, %v755
    %vm757 = vcmask 917312
    %v758 = vsel %vm757, %v756, %v751
    %v759 = vadd.s32 %v391, 4294967184
    %v760 = vlaneseq
    %v761 = vshrl.u32 %v760, 7
    %v762 = vsub.s32 %v759, %v761
    %v763 = vrot.slane %v648, %v762
    %vm764 = vcmask 982912
    %v765 = vsel %vm764, %v763, %v758
    %v766 = vadd.s32 %v391, 4294967176
    %v767 = vlaneseq
    %v768 = vshrl.u32 %v767, 7
    %v769 = vsub.s32 %v766, %v768
    %v770 = vrot.slane %v663, %v769
    %vm771 = vcmask 1048512
    %v772 = vsel %vm771, %v770, %v765
    %773 = vst [vmem:[#allocation2] sm:$0x1] %v772
    %v790 = vlaneseq
    %v791 = vshrl.u32 %v790, 7
    %v792 = vsub.s32 %v391, %v791
    %v793 = vrot.slane %v344, %v792
    %v794 = vlaneseq
    %v795 = vshrl.u32 %v794, 7
    %v796 = vsub.s32 %v668, %v795
    %v797 = vrot.slane %v347, %v796
    %v798 = vsel %vm673, %v797, %v793
    %v799 = vlaneseq
    %v800 = vshrl.u32 %v799, 7
    %v801 = vsub.s32 %v675, %v800
    %v802 = vrot.slane %v350, %v801
    %v803 = vsel %vm680, %v802, %v798
    %v804 = vlaneseq
    %v805 = vshrl.u32 %v804, 7
    %v806 = vsub.s32 %v682, %v805
    %v807 = vrot.slane %v353, %v806
    %v808 = vsel %vm687, %v807, %v803
    %v809 = vlaneseq
    %v810 = vshrl.u32 %v809, 7
    %v811 = vsub.s32 %v689, %v810
    %v812 = vrot.slane %v356, %v811
    %v813 = vsel %vm694, %v812, %v808
    %v814 = vlaneseq
    %v815 = vshrl.u32 %v814, 7
    %v816 = vsub.s32 %v696, %v815
    %v817 = vrot.slane %v359, %v816
    %v818 = vsel %vm701, %v817, %v813
    %v819 = vlaneseq
    %v820 = vshrl.u32 %v819, 7
    %v821 = vsub.s32 %v703, %v820
    %v822 = vrot.slane %v362, %v821
    %v823 = vsel %vm708, %v822, %v818
    %v824 = vlaneseq
    %v825 = vshrl.u32 %v824, 7
    %v826 = vsub.s32 %v710, %v825
    %v827 = vrot.slane %v365, %v826
    %v828 = vsel %vm715, %v827, %v823
    %v829 = vlaneseq
    %v830 = vshrl.u32 %v829, 7
    %v831 = vsub.s32 %v717, %v830
    %v832 = vrot.slane %v368, %v831
    %v833 = vsel %vm722, %v832, %v828
    %v834 = vlaneseq
    %v835 = vshrl.u32 %v834, 7
    %v836 = vsub.s32 %v724, %v835
    %v837 = vrot.slane %v371, %v836
    %v838 = vsel %vm729, %v837, %v833
    %v839 = vlaneseq
    %v840 = vshrl.u32 %v839, 7
    %v841 = vsub.s32 %v731, %v840
    %v842 = vrot.slane %v374, %v841
    %v843 = vsel %vm736, %v842, %v838
    %v844 = vlaneseq
    %v845 = vshrl.u32 %v844, 7
    %v846 = vsub.s32 %v738, %v845
    %v847 = vrot.slane %v377, %v846
    %v848 = vsel %vm743, %v847, %v843
    %v849 = vlaneseq
    %v850 = vshrl.u32 %v849, 7
    %v851 = vsub.s32 %v745, %v850
    %v852 = vrot.slane %v380, %v851
    %v853 = vsel %vm750, %v852, %v848
    %v854 = vlaneseq
    %v855 = vshrl.u32 %v854, 7
    %v856 = vsub.s32 %v752, %v855
    %v857 = vrot.slane %v383, %v856
    %v858 = vsel %vm757, %v857, %v853
    %v859 = vlaneseq
    %v860 = vshrl.u32 %v859, 7
    %v861 = vsub.s32 %v759, %v860
    %v862 = vrot.slane %v386, %v861
    %v863 = vsel %vm764, %v862, %v858
    %v864 = vlaneseq
    %v865 = vshrl.u32 %v864, 7
    %v866 = vsub.s32 %v766, %v865
    %v867 = vrot.slane %v389, %v866
    %v868 = vsel %vm771, %v867, %v863
    %870 = vst [vmem:[#allocation4] sm:$0x1] %v868
    // Predicated region
    $region10: #{tpu_custom_call.1} parent=1 // pred_check
      _
    $region11: #{tpu_custom_call.1} parent=1 // pred_check_branch
      %872 = sbr.rel (0) target = $region13
    $region12: #{tpu_custom_call.1} parent=1 // pred_region
      %s874 = ssub.s32 16, 16
      %875 = vsyncadd [#allocation3], %s874
      %s877 = sshll.u32 [#allocation2], 4
      %s878 = int_to_ptr.vmem [resolvable:$true] %s877
      %880 = dma.vmem_to_hbm [thread:$0]  %s878, 16, %s2, [#allocation3]
    $region13: #{tpu_custom_call.1} parent=1 // pred_fallthru
      _
    // Predicated region
    $region14: #{tpu_custom_call.1} parent=1 // pred_check
      _
    $region15: #{tpu_custom_call.1} parent=1 // pred_check_branch
      %882 = sbr.rel (0) target = $region17
    $region16: #{tpu_custom_call.1} parent=1 // pred_region
      %s884 = ssub.s32 16, 16
      %885 = vsyncadd [#allocation5], %s884
      %s887 = sshll.u32 [#allocation4], 4
      %s888 = int_to_ptr.vmem [resolvable:$true] %s887
      %890 = dma.vmem_to_hbm [thread:$0]  %s888, 16, %s3, [#allocation5]
    $region17: #{tpu_custom_call.1} parent=1 // pred_fallthru
      _
    // Predicated region
    $region18: #{tpu_custom_call.1} parent=1 // pred_check
      _
    $region19: #{tpu_custom_call.1} parent=1 // pred_check_branch
      %892 = sbr.rel (0) target = $region21
    $region20: #{tpu_custom_call.1} parent=1 // pred_region
      %893 = dma.done [#allocation3], 16
    $region21: #{tpu_custom_call.1} parent=1 // pred_fallthru
      _
    // Predicated region
    $region22: #{tpu_custom_call.1} parent=1 // pred_check
      _
    $region23: #{tpu_custom_call.1} parent=1 // pred_check_branch
      %895 = sbr.rel (0) target = $region25
    $region24: #{tpu_custom_call.1} parent=1 // pred_region
      %896 = dma.done [#allocation5], 16
    $region25: #{tpu_custom_call.1} parent=1 // pred_fallthru
      _
    %897 = vsyncpa [#allocation3], 1
    %898 = vsyncpa [#allocation5], 1

</llo_original>
